<compile_context>
chip_gen: v5e
topology: v5e:2x2
jax: 0.10.0
libtpu: 0.0.40
codegen_flags: <defaults>
</compile_context>

<pallas_src>
import functools

import jax
import jax.numpy as jnp
from jax.experimental import pallas as pl
from jax.experimental.pallas import tpu as pltpu

SMOOTH = 1e-05
LANE = 128
MAX_TILE = 1 << 16   # lane-tile safety cap (multiple of 128)


def _round_up(x, m):
    return (x + m - 1) // m * m


def _vmem_caps():
    """Return (tile VMEM budget, compiler vmem limit) for the local chip."""
    cap = 64 << 20   # conservative default = v7x per-TensorCore physical VMEM
    try:
        cap = int(pltpu.get_tpu_info().vmem_capacity_bytes)
    except Exception:
        pass
    budget = min(32 << 20, max(8 << 20, cap // 4))
    limit = max(min(cap // 2, 64 << 20), budget + (8 << 20))
    return budget, limit


def _pick_tile(n_classes, hw, score_dtype, budget):
    """Largest lane tile (multiple of 128) that fits the VMEM budget."""
    itemsize = jnp.dtype(score_dtype).itemsize
    # Sublane-padded row counts (bf16 pads C to 16, int8 labels to 32, f32 to 8).
    c_in = _round_up(n_classes, max(8, 32 // itemsize))
    c_f32 = _round_up(n_classes, 8)
    per_col = (2 * c_in * itemsize    # double-buffered score block
               + 64                   # double-buffered label block (sublane-padded)
               + 6 * c_f32 * 4)       # conservative estimate of in-kernel f32 temps
    tm_budget = max(LANE, (budget // per_col) // LANE * LANE)
    return min(MAX_TILE, _round_up(hw, LANE), tm_budget)


def _dice_kernel(score_ref, labels_ref,
                 inter_out, ysum_out, zsum_out,
                 *, apply_softmax, hw_valid, ragged):
    j = pl.program_id(1)

    @pl.when(j == 0)
    def _():
        inter_out[...] = jnp.zeros_like(inter_out)
        ysum_out[...] = jnp.zeros_like(ysum_out)
        zsum_out[...] = jnp.zeros_like(zsum_out)

    score = score_ref[...].astype(jnp.float32)    # (C, TM) — cast on load
    labels = labels_ref[...].astype(jnp.int32)    # (1, TM) — from int8
    C, TM = score.shape

    if apply_softmax:
        s = score - jnp.max(score, axis=0, keepdims=True)
        e = jnp.exp(s)
        inv = 1.0 / jnp.sum(e, axis=0, keepdims=True)   # one (1, TM) divide
        score = e * inv                                  # C broadcast multiplies

    cls_ids = jax.lax.broadcasted_iota(jnp.int32, (C, TM), 0)
    onehot = (labels == cls_ids).astype(jnp.float32)     # (C, TM)

    def accumulate(sc, oh):
        # Reduce straight into the resident (C, 1) output blocks — no wide
        # (C, TM) accumulator traffic.
        inter_out[...] += jnp.sum(sc * oh, axis=1, keepdims=True)
        ysum_out[...] += jnp.sum(oh, axis=1, keepdims=True)
        zsum_out[...] += jnp.sum(sc * sc, axis=1, keepdims=True)

    if ragged:
        last = pl.num_programs(1) - 1

        @pl.when(j != last)
        def _():
            accumulate(score, onehot)

        @pl.when(j == last)
        def _():
            # The final tile runs past HW: mask both streams (covers any
            # unspecified padded columns, including post-softmax values).
            col = j * TM + jax.lax.broadcasted_iota(jnp.int32, (1, TM), 1)
            valid = col < hw_valid
            accumulate(jnp.where(valid, score, 0.0),
                       jnp.where(valid, onehot, 0.0))
    else:
        accumulate(score, onehot)


def dice_loss_pallas(inputs, target, n_classes, weight=None, softmax=False):
    """inputs: (N, C, H, W) float (any float dtype); target: (N, H, W) ints."""
    N, C, H, W = inputs.shape
    assert C == n_classes
    assert target.shape == (N, H, W), (
        f"predict {inputs.shape} & target {target.shape} shape do not match")

    HW = H * W
    budget, vmem_limit = _vmem_caps()
    tm = _pick_tile(C, HW, inputs.dtype, budget)
    grid = (N, pl.cdiv(HW, tm))
    ragged = (HW % tm) != 0

    # Free reshapes only (no transpose, no pad, no dtype up-cast).
    score = inputs.reshape(N, C, HW)
    label_dtype = jnp.int8 if n_classes <= 127 else jnp.int32
    labels = target.reshape(N, 1, HW).astype(label_dtype)

    kernel = functools.partial(
        _dice_kernel, apply_softmax=softmax, hw_valid=HW, ragged=ragged)

    inter, ysum, zsum = pl.pallas_call(
        kernel,
        out_shape=(
            jax.ShapeDtypeStruct((N, C, 1), jnp.float32),
            jax.ShapeDtypeStruct((N, C, 1), jnp.float32),
            jax.ShapeDtypeStruct((N, C, 1), jnp.float32),
        ),
        grid_spec=pltpu.PrefetchScalarGridSpec(
            num_scalar_prefetch=0,
            grid=grid,
            in_specs=[
                pl.BlockSpec((pl.Squeezed(), C, tm), lambda n, j: (n, 0, j)),
                pl.BlockSpec((pl.Squeezed(), 1, tm), lambda n, j: (n, 0, j)),
            ],
            out_specs=(
                pl.BlockSpec((pl.Squeezed(), C, 1), lambda n, j: (n, 0, 0)),
                pl.BlockSpec((pl.Squeezed(), C, 1), lambda n, j: (n, 0, 0)),
                pl.BlockSpec((pl.Squeezed(), C, 1), lambda n, j: (n, 0, 0)),
            ),
        ),
        compiler_params=pltpu.CompilerParams(
            dimension_semantics=("parallel", "arbitrary"),
            vmem_limit_bytes=vmem_limit),
    )(score, labels)

    # Tiny final combine in plain JAX (C scalars per quantity).
    inter = jnp.sum(inter, axis=0)[:, 0]   # (C,)
    ysum = jnp.sum(ysum, axis=0)[:, 0]
    zsum = jnp.sum(zsum, axis=0)[:, 0]

    if weight is None:
        w = jnp.ones((C,), dtype=jnp.float32)
    else:
        w = jnp.asarray(weight, dtype=jnp.float32).reshape(C)

    dice = 1.0 - (2.0 * inter + SMOOTH) / (zsum + ysum + SMOOTH)
    return jnp.sum(dice * w) / C


def dice_loss_ref(inputs, target, n_classes, weight=None, softmax=False):
    """Pure-JAX reference mirroring the PyTorch module (f32 compute)."""
    inputs = inputs.astype(jnp.float32)
    if softmax:
        inputs = jax.nn.softmax(inputs, axis=1)
    onehot = jnp.stack(
        [(target == i).astype(jnp.float32) for i in range(n_classes)], axis=1)
    if weight is None:
        weight = [1.0] * n_classes
    loss = 0.0
    for i in range(n_classes):
        s = inputs[:, i]
        t = onehot[:, i]
        intersect = jnp.sum(s * t)
        y_sum = jnp.sum(t * t)
        z_sum = jnp.sum(s * s)
        dice = 1.0 - (2.0 * intersect + SMOOTH) / (z_sum + y_sum + SMOOTH)
        loss = loss + dice * weight[i]
    return loss / n_classes


if __name__ == "__main__":
    key = jax.random.PRNGKey(0)
    k1, k2, k3, k4 = jax.random.split(key, 4)

    # Case A/B: aligned spatial size (HW multiple of 128), f32, +/- softmax.
    N, C, H, W = 2, 4, 16, 16
    inputs = jax.random.normal(k1, (N, C, H, W), dtype=jnp.float32)
    target = jax.random.randint(k2, (N, H, W), 0, C, dtype=jnp.int32)

    out0 = dice_loss_pallas(inputs, target, C, softmax=False)
    jax.block_until_ready(out0)
    ref0 = dice_loss_ref(inputs, target, C, softmax=False)

    out1 = dice_loss_pallas(inputs, target, C, softmax=True)
    jax.block_until_ready(out1)
    ref1 = dice_loss_ref(inputs, target, C, softmax=True)

    # Case C: unaligned spatial size (exercises the ragged-tile mask) + weights.
    H2, W2 = 10, 10
    inputs2 = jax.random.normal(k3, (N, C, H2, W2), dtype=jnp.float32)
    target2 = jax.random.randint(k4, (N, H2, W2), 0, C, dtype=jnp.int32)
    wts = [1.0, 2.0, 0.5, 1.5]

    out2 = dice_loss_pallas(inputs2, target2, C, weight=wts, softmax=True)
    jax.block_until_ready(out2)
    ref2 = dice_loss_ref(inputs2, target2, C, weight=wts, softmax=True)

    # Case D: bf16 logits (native-dtype HBM stream) + int8-narrowed labels.
    inputs_bf16 = inputs.astype(jnp.bfloat16)
    out3 = dice_loss_pallas(inputs_bf16, target.astype(jnp.int8), C, softmax=True)
    jax.block_until_ready(out3)
    ref3 = dice_loss_ref(inputs_bf16, target, C, softmax=True)

    assert jnp.allclose(out0, ref0, rtol=1e-5, atol=1e-6), (out0, ref0)
    assert jnp.allclose(out1, ref1, rtol=1e-5, atol=1e-6), (out1, ref1)
    assert jnp.allclose(out2, ref2, rtol=1e-5, atol=1e-6), (out2, ref2)
    assert jnp.allclose(out3, ref3, rtol=1e-4, atol=1e-5), (out3, ref3)
    print("KERNEL_OK")
</pallas_src>

<mosaic_0001>
module attributes {stable_mosaic.version = 11 : i64} {
  func.func @_dice_kernel(%arg0: i32, %arg1: i32, %arg2: memref<1x4x256xf32, #tpu.memory_space<vmem>>, %arg3: memref<1x1x256xi8, #tpu.memory_space<vmem>>, %arg4: memref<1x4x1xf32, #tpu.memory_space<vmem>>, %arg5: memref<1x4x1xf32, #tpu.memory_space<vmem>>, %arg6: memref<1x4x1xf32, #tpu.memory_space<vmem>>) attributes {dimension_semantics = [#tpu.dimension_semantics<parallel>, #tpu.dimension_semantics<arbitrary>], iteration_bounds = array<i64: 2, 1>, scalar_prefetch = 0 : i64, scratch_operands = 0 : i64, tpu.core_type = #tpu.core_type<tc>, window_params = [{transform_indices = @transform_0, window_bounds = array<i64: 1, 4, 256>}, {transform_indices = @transform_1, window_bounds = array<i64: 1, 1, 256>}, {transform_indices = @transform_2, window_bounds = array<i64: 1, 4, 1>}, {transform_indices = @transform_3, window_bounds = array<i64: 1, 4, 1>}, {transform_indices = @transform_4, window_bounds = array<i64: 1, 4, 1>}]} {
    %c0_i32 = arith.constant 0 : i32
    %0 = arith.cmpi eq, %arg1, %c0_i32 : i32
    %1 = arith.extui %0 : i1 to i32
    %c0_i32_0 = arith.constant 0 : i32
    %2 = arith.cmpi ne, %1, %c0_i32_0 : i32
    scf.if %2 {
      %cst_26 = arith.constant 0.000000e+00 : f32
      %39 = vector.broadcast %cst_26 : f32 to vector<4x1xf32>
      %c0_27 = arith.constant 0 : index
      %c0_28 = arith.constant 0 : index
      %c0_29 = arith.constant 0 : index
      %40 = vector.load %arg4[%c0_27, %c0_28, %c0_29] : memref<1x4x1xf32, #tpu.memory_space<vmem>>, vector<1x4x1xf32>
      %41 = vector.shape_cast %40 : vector<1x4x1xf32> to vector<4x1xf32>
      %42 = vector.shape_cast %39 : vector<4x1xf32> to vector<1x4x1xf32>
      tpu.vector_store %arg4[%c0_27, %c0_28, %c0_29], %42 {strides = array<i32>} : memref<1x4x1xf32, #tpu.memory_space<vmem>>, vector<1x4x1xf32>,
      %cst_30 = arith.constant 0.000000e+00 : f32
      %43 = vector.broadcast %cst_30 : f32 to vector<4x1xf32>
      %c0_31 = arith.constant 0 : index
      %c0_32 = arith.constant 0 : index
      %c0_33 = arith.constant 0 : index
      %44 = vector.load %arg5[%c0_31, %c0_32, %c0_33] : memref<1x4x1xf32, #tpu.memory_space<vmem>>, vector<1x4x1xf32>
      %45 = vector.shape_cast %44 : vector<1x4x1xf32> to vector<4x1xf32>
      %46 = vector.shape_cast %43 : vector<4x1xf32> to vector<1x4x1xf32>
      tpu.vector_store %arg5[%c0_31, %c0_32, %c0_33], %46 {strides = array<i32>} : memref<1x4x1xf32, #tpu.memory_space<vmem>>, vector<1x4x1xf32>,
      %cst_34 = arith.constant 0.000000e+00 : f32
      %47 = vector.broadcast %cst_34 : f32 to vector<4x1xf32>
      %c0_35 = arith.constant 0 : index
      %c0_36 = arith.constant 0 : index
      %c0_37 = arith.constant 0 : index
      %48 = vector.load %arg6[%c0_35, %c0_36, %c0_37] : memref<1x4x1xf32, #tpu.memory_space<vmem>>, vector<1x4x1xf32>
      %49 = vector.shape_cast %48 : vector<1x4x1xf32> to vector<4x1xf32>
      %50 = vector.shape_cast %47 : vector<4x1xf32> to vector<1x4x1xf32>
      tpu.vector_store %arg6[%c0_35, %c0_36, %c0_37], %50 {strides = array<i32>} : memref<1x4x1xf32, #tpu.memory_space<vmem>>, vector<1x4x1xf32>,
    } else {
    }
    %c0 = arith.constant 0 : index
    %c0_1 = arith.constant 0 : index
    %c0_2 = arith.constant 0 : index
    %3 = vector.load %arg2[%c0, %c0_1, %c0_2] : memref<1x4x256xf32, #tpu.memory_space<vmem>>, vector<1x4x256xf32>
    %4 = vector.shape_cast %3 : vector<1x4x256xf32> to vector<4x256xf32>
    %c0_3 = arith.constant 0 : index
    %c0_4 = arith.constant 0 : index
    %c0_5 = arith.constant 0 : index
    %5 = vector.load %arg3[%c0_3, %c0_4, %c0_5] : memref<1x1x256xi8, #tpu.memory_space<vmem>>, vector<1x1x256xi8>
    %6 = vector.shape_cast %5 : vector<1x1x256xi8> to vector<1x256xi8>
    %7 = arith.extsi %6 : vector<1x256xi8> to vector<1x256xi32>
    %8 = tpu.iota {dimensions = array<i32: 0>} : vector<4x256xi32>
    %9 = vector.broadcast %7 : vector<1x256xi32> to vector<4x256xi32>
    %10 = arith.cmpi eq, %9, %8 : vector<4x256xi32>
    %11 = arith.extui %10 : vector<4x256xi1> to vector<4x256xi32>
    %12 = arith.sitofp %11 : vector<4x256xi32> to vector<4x256xf32>
    %c0_6 = arith.constant 0 : index
    %c0_7 = arith.constant 0 : index
    %c0_8 = arith.constant 0 : index
    %13 = vector.load %arg4[%c0_6, %c0_7, %c0_8] : memref<1x4x1xf32, #tpu.memory_space<vmem>>, vector<1x4x1xf32>
    %14 = vector.shape_cast %13 : vector<1x4x1xf32> to vector<4x1xf32>
    %15 = arith.mulf %4, %12 : vector<4x256xf32>
    %cst = arith.constant dense<0.000000e+00> : vector<4xf32>
    %16 = vector.multi_reduction <add>, %15, %cst [1] : vector<4x256xf32> to vector<4xf32>
    %17 = vector.shape_cast %16 : vector<4xf32> to vector<4x1xf32>
    %18 = arith.addf %14, %17 : vector<4x1xf32>
    %c0_9 = arith.constant 0 : index
    %c0_10 = arith.constant 0 : index
    %c0_11 = arith.constant 0 : index
    %19 = vector.load %arg4[%c0_9, %c0_10, %c0_11] : memref<1x4x1xf32, #tpu.memory_space<vmem>>, vector<1x4x1xf32>
    %20 = vector.shape_cast %19 : vector<1x4x1xf32> to vector<4x1xf32>
    %21 = vector.shape_cast %18 : vector<4x1xf32> to vector<1x4x1xf32>
    tpu.vector_store %arg4[%c0_9, %c0_10, %c0_11], %21 {strides = array<i32>} : memref<1x4x1xf32, #tpu.memory_space<vmem>>, vector<1x4x1xf32>,
    %c0_12 = arith.constant 0 : index
    %c0_13 = arith.constant 0 : index
    %c0_14 = arith.constant 0 : index
    %22 = vector.load %arg5[%c0_12, %c0_13, %c0_14] : memref<1x4x1xf32, #tpu.memory_space<vmem>>, vector<1x4x1xf32>
    %23 = vector.shape_cast %22 : vector<1x4x1xf32> to vector<4x1xf32>
    %cst_15 = arith.constant dense<0.000000e+00> : vector<4xf32>
    %24 = vector.multi_reduction <add>, %12, %cst_15 [1] : vector<4x256xf32> to vector<4xf32>
    %25 = vector.shape_cast %24 : vector<4xf32> to vector<4x1xf32>
    %26 = arith.addf %23, %25 : vector<4x1xf32>
    %c0_16 = arith.constant 0 : index
    %c0_17 = arith.constant 0 : index
    %c0_18 = arith.constant 0 : index
    %27 = vector.load %arg5[%c0_16, %c0_17, %c0_18] : memref<1x4x1xf32, #tpu.memory_space<vmem>>, vector<1x4x1xf32>
    %28 = vector.shape_cast %27 : vector<1x4x1xf32> to vector<4x1xf32>
    %29 = vector.shape_cast %26 : vector<4x1xf32> to vector<1x4x1xf32>
    tpu.vector_store %arg5[%c0_16, %c0_17, %c0_18], %29 {strides = array<i32>} : memref<1x4x1xf32, #tpu.memory_space<vmem>>, vector<1x4x1xf32>,
    %c0_19 = arith.constant 0 : index
    %c0_20 = arith.constant 0 : index
    %c0_21 = arith.constant 0 : index
    %30 = vector.load %arg6[%c0_19, %c0_20, %c0_21] : memref<1x4x1xf32, #tpu.memory_space<vmem>>, vector<1x4x1xf32>
    %31 = vector.shape_cast %30 : vector<1x4x1xf32> to vector<4x1xf32>
    %32 = arith.mulf %4, %4 : vector<4x256xf32>
    %cst_22 = arith.constant dense<0.000000e+00> : vector<4xf32>
    %33 = vector.multi_reduction <add>, %32, %cst_22 [1] : vector<4x256xf32> to vector<4xf32>
    %34 = vector.shape_cast %33 : vector<4xf32> to vector<4x1xf32>
    %35 = arith.addf %31, %34 : vector<4x1xf32>
    %c0_23 = arith.constant 0 : index
    %c0_24 = arith.constant 0 : index
    %c0_25 = arith.constant 0 : index
    %36 = vector.load %arg6[%c0_23, %c0_24, %c0_25] : memref<1x4x1xf32, #tpu.memory_space<vmem>>, vector<1x4x1xf32>
    %37 = vector.shape_cast %36 : vector<1x4x1xf32> to vector<4x1xf32>
    %38 = vector.shape_cast %35 : vector<4x1xf32> to vector<1x4x1xf32>
    tpu.vector_store %arg6[%c0_23, %c0_24, %c0_25], %38 {strides = array<i32>} : memref<1x4x1xf32, #tpu.memory_space<vmem>>, vector<1x4x1xf32>,
    return
  }
  func.func @transform_0(%arg0: i32, %arg1: i32) -> (i32, i32, i32) {
    %c0_i32 = arith.constant 0 : i32
    %c0_i32_0 = arith.constant 0 : i32
    return %arg0, %c0_i32, %arg1 : i32, i32, i32
  }
  func.func @transform_1(%arg0: i32, %arg1: i32) -> (i32, i32, i32) {
    %c0_i32 = arith.constant 0 : i32
    %c0_i32_0 = arith.constant 0 : i32
    return %arg0, %c0_i32, %arg1 : i32, i32, i32
  }
  func.func @transform_2(%arg0: i32, %arg1: i32) -> (i32, i32, i32) {
    %c0_i32 = arith.constant 0 : i32
    %c0_i32_0 = arith.constant 0 : i32
    %c0_i32_1 = arith.constant 0 : i32
    return %arg0, %c0_i32, %c0_i32_0 : i32, i32, i32
  }
  func.func @transform_3(%arg0: i32, %arg1: i32) -> (i32, i32, i32) {
    %c0_i32 = arith.constant 0 : i32
    %c0_i32_0 = arith.constant 0 : i32
    %c0_i32_1 = arith.constant 0 : i32
    return %arg0, %c0_i32, %c0_i32_0 : i32, i32, i32
  }
  func.func @transform_4(%arg0: i32, %arg1: i32) -> (i32, i32, i32) {
    %c0_i32 = arith.constant 0 : i32
    %c0_i32_0 = arith.constant 0 : i32
    %c0_i32_1 = arith.constant 0 : i32
    return %arg0, %c0_i32, %c0_i32_0 : i32, i32, i32
  }
}

</mosaic_0001>

<llo_original>
// kernel: tpu_custom_call.1
$region0: #{tpu_custom_call.1}
  #allocation0 [shape = 'u32[]', space=smem, size = 0x4, offset = 0x4, fixed_abs, tag = 'smem constant byte address 0x4 - core index']
  #allocation1 [shape = 'u32[72,128]{1,0:T(1,128)}', space=vmem, size = 0x9000, scoped, tag = 'internal scratch']
  %s0 = inlined_call_operand.hbm [shape: f32[2,4,256], index: 0, kind: input, shape index: {}]
  %s1 = inlined_call_operand.vmem [shape: s8[2,1,256], index: 1, kind: input, shape index: {}]
  %s2 = inlined_call_operand.vmem [shape: f32[2,4,1], index: 2, kind: output, shape index: {0}]
  %s3 = inlined_call_operand.vmem [shape: f32[2,4,1], index: 3, kind: output, shape index: {1}]
  %s4 = inlined_call_operand.vmem [shape: f32[2,4,1], index: 4, kind: output, shape index: {2}]
  %5 = xla_tuple %s2, %s3, %s4
  %s6 = sld [smem:[#allocation0]]
  $region65: #{tpu_custom_call.1} parent=0
    _
  %s8 = ssub.s32 1, %s6
  %s9 = scalar_select 0, %s8, %s6
  $region1: #{tpu_custom_call.1} parent=0
    #allocation2 [shape = 'u8[8192]{0}', space=vmem, size = 0x2000, scoped, tag = 'input window, operand 0']
    #allocation3 [shape = 's32[2]{0}', space=sflag, size = 0x8, scoped, tag = 'scoped memory for tpu_custom_call.1']
    %10 = vsyncpa [#allocation3], 0
    %s11 = scalar_lea.sflag [#allocation3], 1
    %12 = vsyncpa %s11, 0
    loop: start=0, step=1, limit=4
    $region2: #{tpu_custom_call.1} parent=1 // loop_pre_header
      _
    $region3: #{tpu_custom_call.1} parent=1 // loop_header
      %s14 = sphi 0, %s18
      %p15 = scmp.ge.s32.totalorder %s14, 4
      %s21 = sphi 0, %s33
      %s22 = sphi 0, %s29
      %s23 = sphi 0, %s21
      %s24 = sphi 0, %s22
      %s25 = sphi 0, %s23
      %s26 = sphi 0, %s24
      %s38 = sphi 0, %s40
      %s41 = sphi 0, %s38
      %s42 = sphi 0, %s41
      %s58 = sphi 0, %s42
      %s66 = sphi 0, %s68
      %s69 = sphi 0, %s66
      %s70 = sphi 0, %s69
      %s86 = sphi 0, %s70
      %s92 = sphi 0, %s94
      %s95 = sphi 0, %s92
      %s96 = sphi 0, %s95
      %s112 = sphi 0, %s96
      %s118 = sphi 0, %s120
      %s121 = sphi 0, %s118
      %s122 = sphi 0, %s121
      %s138 = sphi 0, %s122
      %s144 = sphi 0, %s146
      %s147 = sphi 0, %s144
      %s148 = sphi 0, %s147
      %s164 = sphi 0, %s148
    $region4: #{tpu_custom_call.1} parent=1 // loop_header_branch
      %17 = sbr.rel (%p15) target = $region8
    $region5: #{tpu_custom_call.1} parent=1 // loop_body
      %s19 = ssub.s32 %s14, 1
      %s20 = ssub.s32 %s14, 2
      %s27 = sadd.s32 1, %s22
      %p28 = scmp.ge.s32.totalorder %s27, 1
      %s29 = scalar_select %p28, 0, %s27
      %s30 = sadd.s32 1, %s21
      %s31 = scalar_select %p28, %s30, %s21
      %p32 = scmp.ge.s32.totalorder %s31, 2
      %s33 = scalar_select %p32, 0, %s31
      %s34 = ssub.s32 %s21, %s33
      %s35 = ssub.s32 %s22, %s29
      %s36 = sor.u32 %s34, %s35
      %p37 = scmp.eq.s32.totalorder %s36, 0
      %s39 = sadd.s32 %s38, 1
      %s40 = scalar_select %p37, %s38, %s39
      %p43 = pneg %p37
      %p44 = scmp.eq.s32.totalorder %s14, 1
      %p45 = por %p43, %p44
      %p46 = scmp.ne.s32.totalorder %s38, %s41
      %p47 = scmp.eq.s32.totalorder %s14, 0
      %p48 = por %p46, %p47
      %p49 = scmp.ne.s32.totalorder %s38, %s41
      %p50 = scmp.eq.s32.totalorder %s19, 1
      %p51 = por %p49, %p50
      %p52 = scmp.ne.s32.totalorder %s41, %s42
      %p53 = scmp.eq.s32.totalorder %s19, 0
      %p54 = por %p52, %p53
      %p55 = scmp.ne.s32.totalorder %s41, %s42
      %p56 = scmp.eq.s32.totalorder %s20, 1
      %p57 = por %p55, %p56
      %p59 = scmp.ne.s32.totalorder %s42, %s58
      %p60 = scmp.eq.s32.totalorder %s20, 0
      %p61 = por %p59, %p60
      %s62 = ssub.s32 %s21, %s33
      %s63 = ssub.s32 %s22, %s29
      %s64 = sor.u32 %s62, %s63
      %p65 = scmp.eq.s32.totalorder %s64, 0
      %s67 = sadd.s32 %s66, 1
      %s68 = scalar_select %p65, %s66, %s67
      %p71 = pneg %p65
      %p72 = scmp.eq.s32.totalorder %s14, 1
      %p73 = por %p71, %p72
      %p74 = scmp.ne.s32.totalorder %s66, %s69
      %p75 = scmp.eq.s32.totalorder %s14, 0
      %p76 = por %p74, %p75
      %p77 = scmp.ne.s32.totalorder %s66, %s69
      %p78 = scmp.eq.s32.totalorder %s19, 1
      %p79 = por %p77, %p78
      %p80 = scmp.ne.s32.totalorder %s69, %s70
      %p81 = scmp.eq.s32.totalorder %s19, 0
      %p82 = por %p80, %p81
      %p83 = scmp.ne.s32.totalorder %s69, %s70
      %p84 = scmp.eq.s32.totalorder %s20, 1
      %p85 = por %p83, %p84
      %p87 = scmp.ne.s32.totalorder %s70, %s86
      %p88 = scmp.eq.s32.totalorder %s20, 0
      %p89 = por %p87, %p88
      %s90 = ssub.s32 %s21, %s33
      %p91 = scmp.eq.s32.totalorder %s90, 0
      %s93 = sadd.s32 %s92, 1
      %s94 = scalar_select %p91, %s92, %s93
      %p97 = pneg %p91
      %p98 = scmp.eq.s32.totalorder %s14, 1
      %p99 = por %p97, %p98
      %p100 = scmp.ne.s32.totalorder %s92, %s95
      %p101 = scmp.eq.s32.totalorder %s14, 0
      %p102 = por %p100, %p101
      %p103 = scmp.ne.s32.totalorder %s92, %s95
      %p104 = scmp.eq.s32.totalorder %s19, 1
      %p105 = por %p103, %p104
      %p106 = scmp.ne.s32.totalorder %s95, %s96
      %p107 = scmp.eq.s32.totalorder %s19, 0
      %p108 = por %p106, %p107
      %p109 = scmp.ne.s32.totalorder %s95, %s96
      %p110 = scmp.eq.s32.totalorder %s20, 1
      %p111 = por %p109, %p110
      %p113 = scmp.ne.s32.totalorder %s96, %s112
      %p114 = scmp.eq.s32.totalorder %s20, 0
      %p115 = por %p113, %p114
      %s116 = ssub.s32 %s21, %s33
      %p117 = scmp.eq.s32.totalorder %s116, 0
      %s119 = sadd.s32 %s118, 1
      %s120 = scalar_select %p117, %s118, %s119
      %p123 = pneg %p117
      %p124 = scmp.eq.s32.totalorder %s14, 1
      %p125 = por %p123, %p124
      %p126 = scmp.ne.s32.totalorder %s118, %s121
      %p127 = scmp.eq.s32.totalorder %s14, 0
      %p128 = por %p126, %p127
      %p129 = scmp.ne.s32.totalorder %s118, %s121
      %p130 = scmp.eq.s32.totalorder %s19, 1
      %p131 = por %p129, %p130
      %p132 = scmp.ne.s32.totalorder %s121, %s122
      %p133 = scmp.eq.s32.totalorder %s19, 0
      %p134 = por %p132, %p133
      %p135 = scmp.ne.s32.totalorder %s121, %s122
      %p136 = scmp.eq.s32.totalorder %s20, 1
      %p137 = por %p135, %p136
      %p139 = scmp.ne.s32.totalorder %s122, %s138
      %p140 = scmp.eq.s32.totalorder %s20, 0
      %p141 = por %p139, %p140
      %s142 = ssub.s32 %s21, %s33
      %p143 = scmp.eq.s32.totalorder %s142, 0
      %s145 = sadd.s32 %s144, 1
      %s146 = scalar_select %p143, %s144, %s145
      %p149 = pneg %p143
      %p150 = scmp.eq.s32.totalorder %s14, 1
      %p151 = por %p149, %p150
      %p152 = scmp.ne.s32.totalorder %s144, %s147
      %p153 = scmp.eq.s32.totalorder %s14, 0
      %p154 = por %p152, %p153
      %p155 = scmp.ne.s32.totalorder %s144, %s147
      %p156 = scmp.eq.s32.totalorder %s19, 1
      %p157 = por %p155, %p156
      %p158 = scmp.ne.s32.totalorder %s147, %s148
      %p159 = scmp.eq.s32.totalorder %s19, 0
      %p160 = por %p158, %p159
      %p161 = scmp.ne.s32.totalorder %s147, %s148
      %p162 = scmp.eq.s32.totalorder %s20, 1
      %p163 = por %p161, %p162
      %p165 = scmp.ne.s32.totalorder %s148, %s164
      %p166 = scmp.eq.s32.totalorder %s20, 0
      %p167 = por %p165, %p166
      %p168 = scmp.le.s32.totalorder 1, %s14
      %p169 = scmp.lt.s32.totalorder %s14, 3
      %p170 = pnand %p168, %p169
      %p171 = pneg %p170
      // Predicated region
      $region9: #{tpu_custom_call.1} parent=5 // pred_check
        _
      $region10: #{tpu_custom_call.1} parent=5 // pred_check_branch
        %173 = sbr.rel (%p170) target = $region12
      $region11: #{tpu_custom_call.1} parent=5 // pred_region
        %s174 = ssub.s32 %s14, 1
      $region12: #{tpu_custom_call.1} parent=5 // pred_fallthru
        _
      %p175 = scmp.lt.s32.totalorder %s14, 2
      // Predicated region
      $region13: #{tpu_custom_call.1} parent=5 // pred_check
        %p176 = pneg %p175
      $region14: #{tpu_custom_call.1} parent=5 // pred_check_branch
        %178 = sbr.rel (%p176) target = $region16
      $region15: #{tpu_custom_call.1} parent=5 // pred_region
        // Predicated region
        $region17: #{tpu_custom_call.1} parent=15 // pred_check
          %p179 = pneg %p48
        $region18: #{tpu_custom_call.1} parent=15 // pred_check_branch
          %181 = sbr.rel (%p179) target = $region20
        $region19: #{tpu_custom_call.1} parent=15 // pred_region
          %s182 = sand.u32 %s38, 1
          %s183 = scalar_lea.sflag [#allocation3], %s182
          %s184 = sand.u32 %s38, 1
          %s185 = smul.addr %s184, 8
          %s186 = scalar_lea.vmem [#allocation2], %s185
          %s187 = smul.u32 2, %s22
          %189 = vsyncadd %s183, 0
          %s190 = smul.addr %s21, 2
          %s191 = sadd.s32 %s187, %s190
          %s192 = smul.addr %s191, 4
          %s193 = scalar_lea.hbm %s0, %s192
          %s195 = sshll.u32 %s193, 4
          %s196 = int_to_ptr.hbm [resolvable:$true] %s195
          %s197 = sshll.u32 %s186, 4
          %s198 = int_to_ptr.vmem [resolvable:$true] %s197
          %200 = dma.hbm_to_vmem [thread:$0]  %s196, 128, %s198, %s183
        $region20: #{tpu_custom_call.1} parent=15 // pred_fallthru
          _
        // Predicated region
        $region21: #{tpu_custom_call.1} parent=15 // pred_check
          %p201 = pneg %p76
        $region22: #{tpu_custom_call.1} parent=15 // pred_check_branch
          %203 = sbr.rel (%p201) target = $region24
        $region23: #{tpu_custom_call.1} parent=15 // pred_region
          %s204 = smul.u32 2, %s22
          %p205 = scmp.lt.s32.totalorder %s21, 1
          %s206 = scalar_select %p205, %s21, 1
          %p207 = scmp.lt.s32.totalorder %s204, 1
          %s208 = scalar_select %p207, %s204, 1
          %s209 = smul.addr %s206, 2
          %s210 = sadd.s32 %s208, %s209
          %s211 = scalar_lea.vmem %s1, %s210
          %s212 = smul.u32 2, %s22
        $region24: #{tpu_custom_call.1} parent=15 // pred_fallthru
          _
      $region16: #{tpu_custom_call.1} parent=5 // pred_fallthru
        _
      %p213 = scmp.le.s32.totalorder 1, %s14
      %p214 = scmp.lt.s32.totalorder %s14, 3
      %p215 = pnand %p213, %p214
      %p216 = pneg %p215
      // Predicated region
      $region25: #{tpu_custom_call.1} parent=5 // pred_check
        _
      $region26: #{tpu_custom_call.1} parent=5 // pred_check_branch
        %218 = sbr.rel (%p215) target = $region28
      $region27: #{tpu_custom_call.1} parent=5 // pred_region
        %s219 = ssub.s32 %s14, 1
        %s220 = sand.u32 %s41, 1
        %s221 = scalar_lea.sflag [#allocation3], %s220
        %s222 = sand.u32 %s41, 1
        %s223 = smul.addr %s222, 8
        %s224 = scalar_lea.vmem [#allocation2], %s223
        // Predicated region
        $region29: #{tpu_custom_call.1} parent=27 // pred_check
          %p225 = pneg %p54
        $region30: #{tpu_custom_call.1} parent=27 // pred_check_branch
          %227 = sbr.rel (%p225) target = $region32
        $region31: #{tpu_custom_call.1} parent=27 // pred_region
          %229 = dma.done %s221, 128
        $region32: #{tpu_custom_call.1} parent=27 // pred_fallthru
          _
        %s230 = sand.u32 %s41, 1
        %s231 = scalar_lea.sflag [#allocation3], %s230
        %s232 = sand.u32 %s41, 1
        %s233 = smul.addr %s232, 8
        %s234 = scalar_lea.vmem [#allocation2], %s233
        %p235 = pneg %p54
        %p236 = pneg %p51
        %s237 = smul.u32 2, %s24
        %p238 = scmp.lt.s32.totalorder %s23, 1
        %s239 = scalar_select %p238, %s23, 1
        %p240 = scmp.lt.s32.totalorder %s237, 1
        %s241 = scalar_select %p240, %s237, 1
        %s242 = smul.addr %s239, 2
        %s243 = sadd.s32 %s241, %s242
        %s244 = scalar_lea.vmem %s1, %s243
        %p245 = pneg %p82
        %p246 = pneg %p79
        %p247 = pneg %p108
        %p248 = pneg %p105
        %p249 = scmp.lt.s32.totalorder %s23, 1
        %s250 = scalar_select %p249, %s23, 1
        %s251 = smul.addr %s250, 4
        %s252 = scalar_lea.vmem %s2, %s251
        %p253 = pneg %p134
        %p254 = pneg %p131
        %p255 = scmp.lt.s32.totalorder %s23, 1
        %s256 = scalar_select %p255, %s23, 1
        %s257 = smul.addr %s256, 4
        %s258 = scalar_lea.vmem %s3, %s257
        %p259 = pneg %p160
        %p260 = pneg %p157
        %p261 = scmp.lt.s32.totalorder %s23, 1
        %s262 = scalar_select %p261, %s23, 1
        %s263 = smul.addr %s262, 4
        %s264 = scalar_lea.vmem %s4, %s263
        %s265 = smul.u32 2, %s24
        %s266 = smul.u32 2, %s24
        %p267 = scmp.lt.s32.totalorder %s23, 1
        %s268 = scalar_select %p267, %s23, 1
        %p269 = scmp.lt.s32.totalorder %s266, 1
        %s270 = scalar_select %p269, %s266, 1
        %s271 = smul.addr %s268, 2
        %s272 = sadd.s32 %s270, %s271
        %s273 = scalar_lea.vmem %s1, %s272
        %s274 = smul.u32 2, %s24
        %p275 = scmp.lt.s32.totalorder %s23, 1
        %s276 = scalar_select %p275, %s23, 1
        %s277 = smul.addr %s276, 4
        %s278 = scalar_lea.vmem %s2, %s277
        %p279 = scmp.lt.s32.totalorder %s23, 1
        %s280 = scalar_select %p279, %s23, 1
        %s281 = smul.addr %s280, 4
        %s282 = scalar_lea.vmem %s3, %s281
        %p283 = scmp.lt.s32.totalorder %s23, 1
        %s284 = scalar_select %p283, %s23, 1
        %s285 = smul.addr %s284, 4
        %s286 = scalar_lea.vmem %s4, %s285
        %p287 = scmp.eq.s32.totalorder %s24, 0
        // Predicated region
        $region33: #{tpu_custom_call.1} parent=27 // pred_check
          %p288 = pneg %p287
        $region34: #{tpu_custom_call.1} parent=27 // pred_check_branch
          %290 = sbr.rel (%p288) target = $region36
        $region35: #{tpu_custom_call.1} parent=27 // pred_region
          %vm291 = vcmask 3072
          %292 = vst.msk [vmem:[%s278] sm:$0xf] %vm291, 0.0
          %293 = vst.msk [vmem:[%s282] sm:$0xf] %vm291, 0.0
          %294 = vst.msk [vmem:[%s286] sm:$0xf] %vm291, 0.0
        $region36: #{tpu_custom_call.1} parent=27 // pred_fallthru
          _
        %v295 = vld [vmem:[%s224] sm:$0xff]
        %v296 = vld [vmem:[%s273] sm:$0x3]
        %v297 = vunpack.c.0.s8 %v296
        %v298 = vlaneseq
        %v299 = vshrl.u32 %v298, 7
        %v300 = vperm.slane %v297, 0
        %v301 = vperm.slane %v297, 4
        %v302 = vperm.slane %v300, 0
        %v303 = vperm.slane %v301, 0
        %vm304 = vcmp.eq.s32.totalorder %v302, %v299
        %vm305 = vcmp.eq.s32.totalorder %v303, %v299
        %v306 = vsel %vm304, 1, 0
        %v307 = vsel %vm305, 1, 0
        %v308 = vcvt.s32.f32 %v306
        %v309 = vcvt.s32.f32 %v307
        %v310 = vld [vmem:[%s278] sm:$0xf]
        %v313 = vrot.slane %v309, 4
        %vm314 = vcmask 1043456
        %v315 = vsel %vm314, %v308, %v313
        %v317 = vmul.f32 %v295, %v315
        %319 = vst [vmem:[#allocation1] ss:$2 sm:$0xff] %v317
        %v320 = vld.sshfl [vmem:[#allocation1] sm:$0xff pattern:$0x75316420]
        %v321 = vld.sshfl [vmem:[#allocation1 + $0x8] sm:$0xff pattern:$0x75316420]
        %v324 = vsel %vm314, %v320, 0.0
        %v325 = vsel %vm314, %v321, 0.0
        %v326 = vadd.f32 %v324, %v325
        %327 = vadd.xlane.f32.xlu0 %v326
        %v328 = vpop.xlane.xlu0 %327
        %v329 = vadd.f32 %v310, %v328
        %vm330 = vcmask 3072
        %331 = vst.msk [vmem:[%s278] sm:$0xf] %vm330, %v329
        %v332 = vld [vmem:[%s282] sm:$0xf]
        %v333 = vsel %vm314, %v308, 0.0
        %v334 = vsel %vm314, %v309, 0.0
        %v335 = vadd.f32 %v333, %v334
        %336 = vadd.xlane.f32.xlu0 %v335
        %v337 = vpop.xlane.xlu0 %336
        %v338 = vadd.f32 %v332, %v337
        %339 = vst.msk [vmem:[%s282] sm:$0xf] %vm330, %v338
        %v340 = vld [vmem:[%s286] sm:$0xf]
        %v341 = vmul.f32 %v295, %v295
        %343 = vst [vmem:[#allocation1] ss:$2 sm:$0xff] %v341
        %v344 = vld.sshfl [vmem:[#allocation1] sm:$0xff pattern:$0x75316420]
        %v345 = vld.sshfl [vmem:[#allocation1 + $0x8] sm:$0xff pattern:$0x75316420]
        %v348 = vsel %vm314, %v344, 0.0
        %v349 = vsel %vm314, %v345, 0.0
        %v350 = vadd.f32 %v348, %v349
        %351 = vadd.xlane.f32.xlu0 %v350
        %v352 = vpop.xlane.xlu0 %351
        %v353 = vadd.f32 %v340, %v352
        %354 = vst.msk [vmem:[%s286] sm:$0xf] %vm330, %v353
        %p355 = scmp.lt.s32.totalorder %s23, 1
        %s356 = scalar_select %p355, %s23, 1
        %s357 = smul.addr %s356, 4
        %s358 = scalar_lea.vmem %s2, %s357
        %p359 = scmp.lt.s32.totalorder %s23, 1
        %s360 = scalar_select %p359, %s23, 1
        %s361 = smul.addr %s360, 4
        %s362 = scalar_lea.vmem %s3, %s361
        %p363 = scmp.lt.s32.totalorder %s23, 1
        %s364 = scalar_select %p363, %s23, 1
        %s365 = smul.addr %s364, 4
        %s366 = scalar_lea.vmem %s4, %s365
        // Predicated region
        $region37: #{tpu_custom_call.1} parent=27 // pred_check
          %p367 = pneg %p105
        $region38: #{tpu_custom_call.1} parent=27 // pred_check_branch
          %369 = sbr.rel (%p367) target = $region40
        $region39: #{tpu_custom_call.1} parent=27 // pred_region
          _
        $region40: #{tpu_custom_call.1} parent=27 // pred_fallthru
          _
        // Predicated region
        $region41: #{tpu_custom_call.1} parent=27 // pred_check
          %p370 = pneg %p131
        $region42: #{tpu_custom_call.1} parent=27 // pred_check_branch
          %372 = sbr.rel (%p370) target = $region44
        $region43: #{tpu_custom_call.1} parent=27 // pred_region
          _
        $region44: #{tpu_custom_call.1} parent=27 // pred_fallthru
          _
        // Predicated region
        $region45: #{tpu_custom_call.1} parent=27 // pred_check
          %p373 = pneg %p157
        $region46: #{tpu_custom_call.1} parent=27 // pred_check_branch
          %375 = sbr.rel (%p373) target = $region48
        $region47: #{tpu_custom_call.1} parent=27 // pred_region
          _
        $region48: #{tpu_custom_call.1} parent=27 // pred_fallthru
          _
      $region28: #{tpu_custom_call.1} parent=5 // pred_fallthru
        _
      %p376 = scmp.le.s32.totalorder 2, %s14
      // Predicated region
      $region49: #{tpu_custom_call.1} parent=5 // pred_check
        %p377 = pneg %p376
      $region50: #{tpu_custom_call.1} parent=5 // pred_check_branch
        %379 = sbr.rel (%p377) target = $region52
      $region51: #{tpu_custom_call.1} parent=5 // pred_region
        %s380 = ssub.s32 %s14, 2
        // Predicated region
        $region53: #{tpu_custom_call.1} parent=51 // pred_check
          %p381 = pneg %p111
        $region54: #{tpu_custom_call.1} parent=51 // pred_check_branch
          %383 = sbr.rel (%p381) target = $region56
        $region55: #{tpu_custom_call.1} parent=51 // pred_region
          %p384 = scmp.lt.s32.totalorder %s25, 1
          %s385 = scalar_select %p384, %s25, 1
          %s386 = smul.addr %s385, 4
          %s387 = scalar_lea.vmem %s2, %s386
        $region56: #{tpu_custom_call.1} parent=51 // pred_fallthru
          _
        // Predicated region
        $region57: #{tpu_custom_call.1} parent=51 // pred_check
          %p388 = pneg %p137
        $region58: #{tpu_custom_call.1} parent=51 // pred_check_branch
          %390 = sbr.rel (%p388) target = $region60
        $region59: #{tpu_custom_call.1} parent=51 // pred_region
          %p391 = scmp.lt.s32.totalorder %s25, 1
          %s392 = scalar_select %p391, %s25, 1
          %s393 = smul.addr %s392, 4
          %s394 = scalar_lea.vmem %s3, %s393
        $region60: #{tpu_custom_call.1} parent=51 // pred_fallthru
          _
        // Predicated region
        $region61: #{tpu_custom_call.1} parent=51 // pred_check
          %p395 = pneg %p163
        $region62: #{tpu_custom_call.1} parent=51 // pred_check_branch
          %397 = sbr.rel (%p395) target = $region64
        $region63: #{tpu_custom_call.1} parent=51 // pred_region
          %p398 = scmp.lt.s32.totalorder %s25, 1
          %s399 = scalar_select %p398, %s25, 1
          %s400 = smul.addr %s399, 4
          %s401 = scalar_lea.vmem %s4, %s400
        $region64: #{tpu_custom_call.1} parent=51 // pred_fallthru
          _
      $region52: #{tpu_custom_call.1} parent=5 // pred_fallthru
        _
    $region6: #{tpu_custom_call.1} parent=1 // loop_footer
      %s18 = sadd.s32 1, %s14
    $region7: #{tpu_custom_call.1} parent=1 // loop_footer_branch
      %13 = sbr.rel target = $region3
    $region8: #{tpu_custom_call.1} parent=1 // loop_exit
      _
    %402 = vsyncpa [#allocation3], 1
    %s403 = scalar_lea.sflag [#allocation3], 1
    %404 = vsyncpa %s403, 1

</llo_original>
